<compile_context>
chip_gen: v6e
topology: v6e:2x2x1
jax: 0.10.0
libtpu: 0.0.40
codegen_flags: <defaults>
</compile_context>

<pallas_src>
import math

import jax
import jax.numpy as jnp
from jax import lax
from jax.experimental import pallas as pl
from jax.experimental.pallas import tpu as pltpu

NEG_SLOPE = 0.01  # PyTorch nn.LeakyReLU default


def _alpha_kernel(x_ref, w1_ref, b1_ref, wms_ref, bms_ref, out_ref):
    x = x_ref[...]                                                    # (tm, F)

    # linear_layer: Linear(F, F) + LeakyReLU
    h = jnp.dot(x, w1_ref[...], preferred_element_type=jnp.float32) + b1_ref[...]
    h = jnp.where(h >= 0.0, h, NEG_SLOPE * h)                         # (tm, F)

    # Fused mean/std head, emitted lane-dense:
    #   head[c, t] = sum_f wms[c, f] * h[t, f] + bms[c]   ->  (2, tm)
    head = lax.dot_general(
        wms_ref[...], h, (((1,), (1,)), ((), ())),
        preferred_element_type=jnp.float32) + bms_ref[...]

    # row 0 -> mean (plain linear); row 1 -> std = softplus (stable form).
    # clip(min=0) afterwards is a no-op since softplus >= 0.
    sp = jnp.maximum(head, 0.0) + jnp.log1p(jnp.exp(-jnp.abs(head)))  # (2, tm)
    row = lax.broadcasted_iota(jnp.int32, head.shape, 0)
    out = jnp.where(row == 1, sp, head)                               # (2, tm)

    out_ref[0] = out.astype(out_ref.dtype)


def _round_up(x, m):
    return ((x + m - 1) // m) * m


def _pick_tile_m(m_rows, max_tile=1024):
    """Large row tile (multiple of 8, <= max_tile); keep >=2 grid steps when
    possible so the 'parallel' axis can shard across both v7x TensorCores."""
    tm = min(max_tile, _round_up(m_rows, 8))
    if _round_up(m_rows, tm) // tm < 2 and m_rows > 8:
        tm = max(8, _round_up(pl.cdiv(m_rows, 2), 8))
    return tm


def alpha_layer(feats, params, *, tile_m=None):
    """feats: (..., N, F) -> (mean, std), each of shape feats.shape[:-1]."""
    w1_t, b1, wm_t, bm, ws_t, bs = params
    lead = feats.shape[:-1]
    F = feats.shape[-1]
    M = math.prod(lead)

    if tile_m is None:
        tile_m = _pick_tile_m(M)
    tile_m = max(8, _round_up(min(tile_m, _round_up(M, 8)), 8))

    M_pad = _round_up(M, tile_m)
    num_tiles = M_pad // tile_m

    x2d = feats.reshape(M, F)
    if M_pad != M:
        x2d = jnp.pad(x2d, ((0, M_pad - M), (0, 0)))   # tail rows sliced off below

    b1_2d = b1.reshape(1, F)
    # Fuse the two (F,1) heads into one (2,F) weight and (2,1) bias.
    wms = jnp.concatenate([wm_t.reshape(F, 1), ws_t.reshape(F, 1)], axis=1).T  # (2, F)
    bms = jnp.concatenate([bm.reshape(1), bs.reshape(1)]).reshape(2, 1)        # (2, 1)

    out = pl.pallas_call(
        _alpha_kernel,
        out_shape=jax.ShapeDtypeStruct((num_tiles, 2, tile_m), feats.dtype),
        grid_spec=pltpu.PrefetchScalarGridSpec(
            num_scalar_prefetch=0,
            grid=(num_tiles,),
            in_specs=[
                pl.BlockSpec((tile_m, F), lambda i: (i, 0)),   # feats row tile
                pl.BlockSpec((F, F), lambda i: (0, 0)),        # W1 (in, out), resident
                pl.BlockSpec((1, F), lambda i: (0, 0)),        # b1
                pl.BlockSpec((2, F), lambda i: (0, 0)),        # fused [Wm; Ws]
                pl.BlockSpec((2, 1), lambda i: (0, 0)),        # fused [bm; bs]
            ],
            out_specs=pl.BlockSpec((1, 2, tile_m), lambda i: (i, 0, 0)),
        ),
        compiler_params=pltpu.CompilerParams(
            dimension_semantics=("parallel",)),
    )(x2d, w1_t, b1_2d, wms, bms)

    mean = out[:, 0, :].reshape(M_pad)[:M].reshape(lead)
    std = out[:, 1, :].reshape(M_pad)[:M].reshape(lead)
    return mean, std


def init_params(key, num_feats):
    """Deterministic synthetic params matching nn.Linear shapes.

    PyTorch Linear stores weight as (out, in); we return the transposed
    (in, out) form so the kernel computes x @ W directly.
    """
    k1, k2, k3, k4, k5, k6 = jax.random.split(key, 6)
    bound = 1.0 / math.sqrt(num_feats)
    w1 = jax.random.uniform(k1, (num_feats, num_feats), jnp.float32, -bound, bound)
    b1 = jax.random.uniform(k2, (num_feats,), jnp.float32, -bound, bound)
    wm = jax.random.uniform(k3, (1, num_feats), jnp.float32, -bound, bound)
    bm = jax.random.uniform(k4, (1,), jnp.float32, -bound, bound)
    ws = jax.random.uniform(k5, (1, num_feats), jnp.float32, -bound, bound)
    bs = jax.random.uniform(k6, (1,), jnp.float32, -bound, bound)
    return (w1.T, b1, wm.T, bm, ws.T, bs)


def alpha_layer_ref(feats, params):
    """Pure-JAX reference mirroring the PyTorch forward."""
    w1_t, b1, wm_t, bm, ws_t, bs = params
    h = feats @ w1_t + b1
    h = jnp.where(h >= 0.0, h, NEG_SLOPE * h)
    mean = h @ wm_t + bm
    std = jax.nn.softplus(h @ ws_t + bs)
    return (mean.reshape(feats.shape[:-1]),
            jnp.maximum(std.reshape(feats.shape[:-1]), 0.0))  # clip(min=0)


if __name__ == "__main__":
    batch, n_stocks, num_feats = 2, 8, 32
    key = jax.random.PRNGKey(0)
    k_feat, k_param = jax.random.split(key)

    feats = jax.random.normal(k_feat, (batch, n_stocks, num_feats), jnp.float32)
    params = init_params(k_param, num_feats)

    mean, std = alpha_layer(feats, params)
    mean, std = jax.block_until_ready((mean, std))

    mean_ref, std_ref = alpha_layer_ref(feats, params)
    assert mean.shape == (batch, n_stocks) and std.shape == (batch, n_stocks)
    assert jnp.allclose(mean, mean_ref, atol=1e-5, rtol=1e-5)
    assert jnp.allclose(std, std_ref, atol=1e-5, rtol=1e-5)
    assert bool(jnp.all(std >= 0.0))

    print("KERNEL_OK")
</pallas_src>

<mosaic_0001>
module attributes {stable_mosaic.version = 11 : i64} {
  func.func @_alpha_kernel(%arg0: i32, %arg1: memref<8x32xf32, #tpu.memory_space<vmem>>, %arg2: memref<32x32xf32, #tpu.memory_space<vmem>>, %arg3: memref<1x32xf32, #tpu.memory_space<vmem>>, %arg4: memref<2x32xf32, #tpu.memory_space<vmem>>, %arg5: memref<2x1xf32, #tpu.memory_space<vmem>>, %arg6: memref<1x2x8xf32, #tpu.memory_space<vmem>>) attributes {dimension_semantics = [#tpu.dimension_semantics<parallel>], iteration_bounds = array<i64: 2>, scalar_prefetch = 0 : i64, scratch_operands = 0 : i64, tpu.core_type = #tpu.core_type<tc>, window_params = [{transform_indices = @transform_0, window_bounds = array<i64: 8, 32>}, {pipeline_mode = #tpu.pipeline_mode<synchronous>, transform_indices = @transform_1, window_bounds = array<i64: 32, 32>}, {pipeline_mode = #tpu.pipeline_mode<synchronous>, transform_indices = @transform_2, window_bounds = array<i64: 1, 32>}, {pipeline_mode = #tpu.pipeline_mode<synchronous>, transform_indices = @transform_3, window_bounds = array<i64: 2, 32>}, {pipeline_mode = #tpu.pipeline_mode<synchronous>, transform_indices = @transform_4, window_bounds = array<i64: 2, 1>}, {transform_indices = @transform_5, window_bounds = array<i64: 1, 2, 8>}]} {
    %c0 = arith.constant 0 : index
    %c0_0 = arith.constant 0 : index
    %0 = vector.load %arg1[%c0, %c0_0] : memref<8x32xf32, #tpu.memory_space<vmem>>, vector<8x32xf32>
    %c0_1 = arith.constant 0 : index
    %c0_2 = arith.constant 0 : index
    %1 = vector.load %arg2[%c0_1, %c0_2] : memref<32x32xf32, #tpu.memory_space<vmem>>, vector<32x32xf32>
    %cst = arith.constant dense<0.000000e+00> : vector<8x32xf32>
    %2 = tpu.matmul %0, %1, %cst {dimension_numbers = #tpu.dot_dimension_numbers<[1], [0], [0], [1], [0, 0, 1, 1], [], []>} : vector<8x32xf32>, vector<32x32xf32>, vector<8x32xf32> -> vector<8x32xf32>
    %c0_3 = arith.constant 0 : index
    %c0_4 = arith.constant 0 : index
    %3 = vector.load %arg3[%c0_3, %c0_4] : memref<1x32xf32, #tpu.memory_space<vmem>>, vector<1x32xf32>
    %4 = vector.broadcast %3 : vector<1x32xf32> to vector<8x32xf32>
    %5 = arith.addf %2, %4 : vector<8x32xf32>
    %cst_5 = arith.constant 0.000000e+00 : f32
    %6 = vector.broadcast %cst_5 : f32 to vector<8x32xf32>
    %7 = arith.cmpf oge, %5, %6 : vector<8x32xf32>
    %cst_6 = arith.constant 0.00999999977 : f32
    %8 = vector.broadcast %cst_6 : f32 to vector<8x32xf32>
    %9 = arith.mulf %8, %5 : vector<8x32xf32>
    %10 = arith.select %7, %5, %9 : vector<8x32xi1>, vector<8x32xf32>
    %c0_7 = arith.constant 0 : index
    %c0_8 = arith.constant 0 : index
    %11 = vector.load %arg4[%c0_7, %c0_8] : memref<2x32xf32, #tpu.memory_space<vmem>>, vector<2x32xf32>
    %cst_9 = arith.constant dense<0.000000e+00> : vector<2x8xf32>
    %12 = tpu.matmul %11, %10, %cst_9 {dimension_numbers = #tpu.dot_dimension_numbers<[1], [1], [0], [0], [0, 0, 1, 0], [], []>} : vector<2x32xf32>, vector<8x32xf32>, vector<2x8xf32> -> vector<2x8xf32>
    %c0_10 = arith.constant 0 : index
    %c0_11 = arith.constant 0 : index
    %13 = vector.load %arg5[%c0_10, %c0_11] : memref<2x1xf32, #tpu.memory_space<vmem>>, vector<2x1xf32>
    %14 = vector.broadcast %13 : vector<2x1xf32> to vector<2x8xf32>
    %15 = arith.addf %12, %14 : vector<2x8xf32>
    %cst_12 = arith.constant 0.000000e+00 : f32
    %16 = vector.broadcast %cst_12 : f32 to vector<2x8xf32>
    %17 = arith.maximumf %15, %16 : vector<2x8xf32>
    %18 = math.absf %15 : vector<2x8xf32>
    %cst_13 = arith.constant 0.000000e+00 : f32
    %19 = vector.broadcast %cst_13 : f32 to vector<2x8xf32>
    %20 = arith.subf %19, %18 : vector<2x8xf32>
    %21 = math.exp %20 : vector<2x8xf32>
    %22 = math.log1p %21 : vector<2x8xf32>
    %23 = arith.addf %17, %22 : vector<2x8xf32>
    %24 = tpu.iota {dimensions = array<i32: 0>} : vector<2x8xi32>
    %c1_i32 = arith.constant 1 : i32
    %25 = vector.broadcast %c1_i32 : i32 to vector<2x8xi32>
    %26 = arith.cmpi eq, %24, %25 : vector<2x8xi32>
    %27 = arith.select %26, %23, %15 : vector<2x8xi1>, vector<2x8xf32>
    %c0_14 = arith.constant 0 : index
    %c0_15 = arith.constant 0 : index
    %c0_16 = arith.constant 0 : index
    %28 = vector.load %arg6[%c0_14, %c0_15, %c0_16] : memref<1x2x8xf32, #tpu.memory_space<vmem>>, vector<1x2x8xf32>
    %29 = vector.shape_cast %28 : vector<1x2x8xf32> to vector<2x8xf32>
    %30 = vector.shape_cast %27 : vector<2x8xf32> to vector<1x2x8xf32>
    tpu.vector_store %arg6[%c0_14, %c0_15, %c0_16], %30 {strides = array<i32>} : memref<1x2x8xf32, #tpu.memory_space<vmem>>, vector<1x2x8xf32>,
    return
  }
  func.func @transform_0(%arg0: i32) -> (i32, i32) {
    %c0_i32 = arith.constant 0 : i32
    %c0_i32_0 = arith.constant 0 : i32
    return %arg0, %c0_i32 : i32, i32
  }
  func.func @transform_1(%arg0: i32) -> (i32, i32) {
    %c0_i32 = arith.constant 0 : i32
    %c0_i32_0 = arith.constant 0 : i32
    %c0_i32_1 = arith.constant 0 : i32
    return %c0_i32, %c0_i32_0 : i32, i32
  }
  func.func @transform_2(%arg0: i32) -> (i32, i32) {
    %c0_i32 = arith.constant 0 : i32
    %c0_i32_0 = arith.constant 0 : i32
    %c0_i32_1 = arith.constant 0 : i32
    return %c0_i32, %c0_i32_0 : i32, i32
  }
  func.func @transform_3(%arg0: i32) -> (i32, i32) {
    %c0_i32 = arith.constant 0 : i32
    %c0_i32_0 = arith.constant 0 : i32
    %c0_i32_1 = arith.constant 0 : i32
    return %c0_i32, %c0_i32_0 : i32, i32
  }
  func.func @transform_4(%arg0: i32) -> (i32, i32) {
    %c0_i32 = arith.constant 0 : i32
    %c0_i32_0 = arith.constant 0 : i32
    %c0_i32_1 = arith.constant 0 : i32
    return %c0_i32, %c0_i32_0 : i32, i32
  }
  func.func @transform_5(%arg0: i32) -> (i32, i32, i32) {
    %c0_i32 = arith.constant 0 : i32
    %c0_i32_0 = arith.constant 0 : i32
    %c0_i32_1 = arith.constant 0 : i32
    return %arg0, %c0_i32, %c0_i32_0 : i32, i32, i32
  }
}

</mosaic_0001>

<llo_original>
// kernel: tpu_custom_call.1
$region0: #{tpu_custom_call.1}
  #allocation0 [shape = 'u32[]', space=smem, size = 0x4, offset = 0x4, fixed_abs, tag = 'smem constant byte address 0x4 - core index']
  #allocation1 [shape = 'u32[144,128]{1,0:T(1,128)}', space=vmem, size = 0x12000, scoped, tag = 'internal scratch']
  %s0 = inlined_call_operand.hbm [shape: f32[16,32], index: 0, kind: input, shape index: {}]
  %s1 = inlined_call_operand.hbm [shape: f32[32,32], index: 1, kind: input, shape index: {}]
  %s2 = inlined_call_operand.vmem [shape: f32[1,32], index: 2, kind: input, shape index: {}]
  %s3 = inlined_call_operand.vmem [shape: f32[2,32], index: 3, kind: input, shape index: {}]
  %s4 = inlined_call_operand.vmem [shape: f32[2,1], index: 4, kind: input, shape index: {}]
  %s5 = inlined_call_operand.hbm [shape: f32[2,2,8], index: 5, kind: output, shape index: {}]
  %s6 = sld [smem:[#allocation0]]
  $region61: #{tpu_custom_call.1} parent=0
    _
  %s8 = ssub.s32 1, %s6
  %s9 = scalar_select 0, %s8, %s6
  $region1: #{tpu_custom_call.1} parent=0
    #allocation2 [shape = 'u8[8192]{0}', space=vmem, size = 0x2000, scoped, tag = 'input window, operand 0']
    #allocation3 [shape = 's32[2]{0}', space=sflag, size = 0x8, scoped, tag = 'scoped memory for tpu_custom_call.1']
    #allocation4 [shape = 's32[2]{0}', space=sflag, size = 0x8, scoped, tag = 'scoped memory for tpu_custom_call.1']
    #allocation5 [shape = 'u8[16384]{0}', space=vmem, size = 0x4000, scoped, tag = 'input window, operand 1, single buffered']
    #allocation6 [shape = 's32[1]{0}', space=sflag, size = 0x4, scoped, tag = 'scoped memory for tpu_custom_call.1']
    #allocation7 [shape = 'u8[2048]{0}', space=vmem, size = 0x800, scoped, tag = 'output window, operand 0']
    %10 = vsyncpa [#allocation3], 0
    %s11 = scalar_lea.sflag [#allocation3], 1
    %12 = vsyncpa %s11, 0
    %13 = vsyncpa [#allocation6], 0
    %14 = vsyncpa [#allocation4], 0
    %s15 = scalar_lea.sflag [#allocation4], 1
    %16 = vsyncpa %s15, 0
    loop: start=0, step=1, limit=4
    $region2: #{tpu_custom_call.1} parent=1 // loop_pre_header
      _
    $region3: #{tpu_custom_call.1} parent=1 // loop_header
      %s18 = sphi 0, %s22
      %p19 = scmp.ge.s32.totalorder %s18, 4
      %s28 = sphi 0, %s30
      %s31 = sphi 0, %s28
      %s32 = sphi 0, %s31
      %s48 = sphi 0, %s32
      %s52 = sphi 0, %s52
      %s54 = sphi 0, %s52
      %s55 = sphi 0, %s54
      %s69 = sphi 0, %s55
      %s73 = sphi 0, %s73
      %s75 = sphi 0, %s73
      %s76 = sphi 0, %s75
      %s90 = sphi 0, %s76
      %s94 = sphi 0, %s94
      %s96 = sphi 0, %s94
      %s97 = sphi 0, %s96
      %s111 = sphi 0, %s97
      %s115 = sphi 0, %s115
      %s117 = sphi 0, %s115
      %s118 = sphi 0, %s117
      %s132 = sphi 0, %s118
      %s138 = sphi 0, %s140
      %s141 = sphi 0, %s138
      %s142 = sphi 0, %s141
      %s158 = sphi 0, %s142
    $region4: #{tpu_custom_call.1} parent=1 // loop_header_branch
      %21 = sbr.rel (%p19) target = $region8
    $region5: #{tpu_custom_call.1} parent=1 // loop_body
      %s23 = ssub.s32 %s18, 1
      %s24 = ssub.s32 %s18, 2
      %s25 = sadd.s32 %s18, 1
      %s26 = ssub.s32 %s18, %s25
      %p27 = scmp.eq.s32.totalorder %s26, 0
      %s29 = sadd.s32 %s28, 1
      %s30 = scalar_select %p27, %s28, %s29
      %p33 = pneg %p27
      %p34 = scmp.eq.s32.totalorder %s18, 1
      %p35 = por %p33, %p34
      %p36 = scmp.ne.s32.totalorder %s28, %s31
      %p37 = scmp.eq.s32.totalorder %s18, 0
      %p38 = por %p36, %p37
      %p39 = scmp.ne.s32.totalorder %s28, %s31
      %p40 = scmp.eq.s32.totalorder %s23, 1
      %p41 = por %p39, %p40
      %p42 = scmp.ne.s32.totalorder %s31, %s32
      %p43 = scmp.eq.s32.totalorder %s23, 0
      %p44 = por %p42, %p43
      %p45 = scmp.ne.s32.totalorder %s31, %s32
      %p46 = scmp.eq.s32.totalorder %s24, 1
      %p47 = por %p45, %p46
      %p49 = scmp.ne.s32.totalorder %s32, %s48
      %p50 = scmp.eq.s32.totalorder %s24, 0
      %p51 = por %p49, %p50
      %s53 = sadd.s32 %s52, 1
      %p56 = scmp.eq.s32.totalorder %s18, 1
      %p57 = scmp.ne.s32.totalorder %s52, %s54
      %p58 = scmp.eq.s32.totalorder %s18, 0
      %p59 = por %p57, %p58
      %p60 = scmp.ne.s32.totalorder %s52, %s54
      %p61 = scmp.eq.s32.totalorder %s23, 1
      %p62 = por %p60, %p61
      %p63 = scmp.ne.s32.totalorder %s54, %s55
      %p64 = scmp.eq.s32.totalorder %s23, 0
      %p65 = por %p63, %p64
      %p66 = scmp.ne.s32.totalorder %s54, %s55
      %p67 = scmp.eq.s32.totalorder %s24, 1
      %p68 = por %p66, %p67
      %p70 = scmp.ne.s32.totalorder %s55, %s69
      %p71 = scmp.eq.s32.totalorder %s24, 0
      %p72 = por %p70, %p71
      %s74 = sadd.s32 %s73, 1
      %p77 = scmp.eq.s32.totalorder %s18, 1
      %p78 = scmp.ne.s32.totalorder %s73, %s75
      %p79 = scmp.eq.s32.totalorder %s18, 0
      %p80 = por %p78, %p79
      %p81 = scmp.ne.s32.totalorder %s73, %s75
      %p82 = scmp.eq.s32.totalorder %s23, 1
      %p83 = por %p81, %p82
      %p84 = scmp.ne.s32.totalorder %s75, %s76
      %p85 = scmp.eq.s32.totalorder %s23, 0
      %p86 = por %p84, %p85
      %p87 = scmp.ne.s32.totalorder %s75, %s76
      %p88 = scmp.eq.s32.totalorder %s24, 1
      %p89 = por %p87, %p88
      %p91 = scmp.ne.s32.totalorder %s76, %s90
      %p92 = scmp.eq.s32.totalorder %s24, 0
      %p93 = por %p91, %p92
      %s95 = sadd.s32 %s94, 1
      %p98 = scmp.eq.s32.totalorder %s18, 1
      %p99 = scmp.ne.s32.totalorder %s94, %s96
      %p100 = scmp.eq.s32.totalorder %s18, 0
      %p101 = por %p99, %p100
      %p102 = scmp.ne.s32.totalorder %s94, %s96
      %p103 = scmp.eq.s32.totalorder %s23, 1
      %p104 = por %p102, %p103
      %p105 = scmp.ne.s32.totalorder %s96, %s97
      %p106 = scmp.eq.s32.totalorder %s23, 0
      %p107 = por %p105, %p106
      %p108 = scmp.ne.s32.totalorder %s96, %s97
      %p109 = scmp.eq.s32.totalorder %s24, 1
      %p110 = por %p108, %p109
      %p112 = scmp.ne.s32.totalorder %s97, %s111
      %p113 = scmp.eq.s32.totalorder %s24, 0
      %p114 = por %p112, %p113
      %s116 = sadd.s32 %s115, 1
      %p119 = scmp.eq.s32.totalorder %s18, 1
      %p120 = scmp.ne.s32.totalorder %s115, %s117
      %p121 = scmp.eq.s32.totalorder %s18, 0
      %p122 = por %p120, %p121
      %p123 = scmp.ne.s32.totalorder %s115, %s117
      %p124 = scmp.eq.s32.totalorder %s23, 1
      %p125 = por %p123, %p124
      %p126 = scmp.ne.s32.totalorder %s117, %s118
      %p127 = scmp.eq.s32.totalorder %s23, 0
      %p128 = por %p126, %p127
      %p129 = scmp.ne.s32.totalorder %s117, %s118
      %p130 = scmp.eq.s32.totalorder %s24, 1
      %p131 = por %p129, %p130
      %p133 = scmp.ne.s32.totalorder %s118, %s132
      %p134 = scmp.eq.s32.totalorder %s24, 0
      %p135 = por %p133, %p134
      %s136 = ssub.s32 %s18, %s25
      %p137 = scmp.eq.s32.totalorder %s136, 0
      %s139 = sadd.s32 %s138, 1
      %s140 = scalar_select %p137, %s138, %s139
      %p143 = pneg %p137
      %p144 = scmp.eq.s32.totalorder %s18, 1
      %p145 = por %p143, %p144
      %p146 = scmp.ne.s32.totalorder %s138, %s141
      %p147 = scmp.eq.s32.totalorder %s18, 0
      %p148 = por %p146, %p147
      %p149 = scmp.ne.s32.totalorder %s138, %s141
      %p150 = scmp.eq.s32.totalorder %s23, 1
      %p151 = por %p149, %p150
      %p152 = scmp.ne.s32.totalorder %s141, %s142
      %p153 = scmp.eq.s32.totalorder %s23, 0
      %p154 = por %p152, %p153
      %p155 = scmp.ne.s32.totalorder %s141, %s142
      %p156 = scmp.eq.s32.totalorder %s24, 1
      %p157 = por %p155, %p156
      %p159 = scmp.ne.s32.totalorder %s142, %s158
      %p160 = scmp.eq.s32.totalorder %s24, 0
      %p161 = por %p159, %p160
      %p162 = scmp.le.s32.totalorder 1, %s18
      %p163 = scmp.lt.s32.totalorder %s18, 3
      %p164 = pnand %p162, %p163
      %p165 = pneg %p164
      // Predicated region
      $region9: #{tpu_custom_call.1} parent=5 // pred_check
        _
      $region10: #{tpu_custom_call.1} parent=5 // pred_check_branch
        %167 = sbr.rel (%p164) target = $region12
      $region11: #{tpu_custom_call.1} parent=5 // pred_region
        %s168 = ssub.s32 %s18, 1
        // Predicated region
        $region13: #{tpu_custom_call.1} parent=11 // pred_check
          %p169 = pneg %p65
        $region14: #{tpu_custom_call.1} parent=11 // pred_check_branch
          %171 = sbr.rel (%p169) target = $region16
        $region15: #{tpu_custom_call.1} parent=11 // pred_region
          %s173 = ssub.s32 512, 512
          %174 = vsyncadd [#allocation6], %s173
          %s175 = sshll.u32 [#allocation5], 4
          %s176 = int_to_ptr.vmem [resolvable:$true] %s175
          %181 = dma.hbm_to_vmem [thread:$0]  %s1, 512, %s176, [#allocation6], 128, 128, 8
        $region16: #{tpu_custom_call.1} parent=11 // pred_fallthru
          _
        // Predicated region
        $region17: #{tpu_custom_call.1} parent=11 // pred_check
          %p182 = pneg %p86
        $region18: #{tpu_custom_call.1} parent=11 // pred_check_branch
          %184 = sbr.rel (%p182) target = $region20
        $region19: #{tpu_custom_call.1} parent=11 // pred_region
          _
        $region20: #{tpu_custom_call.1} parent=11 // pred_fallthru
          _
        // Predicated region
        $region21: #{tpu_custom_call.1} parent=11 // pred_check
          %p185 = pneg %p107
        $region22: #{tpu_custom_call.1} parent=11 // pred_check_branch
          %187 = sbr.rel (%p185) target = $region24
        $region23: #{tpu_custom_call.1} parent=11 // pred_region
          _
        $region24: #{tpu_custom_call.1} parent=11 // pred_fallthru
          _
        // Predicated region
        $region25: #{tpu_custom_call.1} parent=11 // pred_check
          %p188 = pneg %p128
        $region26: #{tpu_custom_call.1} parent=11 // pred_check_branch
          %190 = sbr.rel (%p188) target = $region28
        $region27: #{tpu_custom_call.1} parent=11 // pred_region
          _
        $region28: #{tpu_custom_call.1} parent=11 // pred_fallthru
          _
      $region12: #{tpu_custom_call.1} parent=5 // pred_fallthru
        _
      %p191 = scmp.lt.s32.totalorder %s18, 2
      // Predicated region
      $region29: #{tpu_custom_call.1} parent=5 // pred_check
        %p192 = pneg %p191
      $region30: #{tpu_custom_call.1} parent=5 // pred_check_branch
        %194 = sbr.rel (%p192) target = $region32
      $region31: #{tpu_custom_call.1} parent=5 // pred_region
        // Predicated region
        $region33: #{tpu_custom_call.1} parent=31 // pred_check
          %p195 = pneg %p38
        $region34: #{tpu_custom_call.1} parent=31 // pred_check_branch
          %197 = sbr.rel (%p195) target = $region36
        $region35: #{tpu_custom_call.1} parent=31 // pred_region
          %s198 = sand.u32 %s28, 1
          %s199 = scalar_lea.sflag [#allocation3], %s198
          %s200 = sand.u32 %s28, 1
          %s201 = smul.addr %s200, 8
          %s202 = scalar_lea.vmem [#allocation2], %s201
          %s204 = ssub.s32 128, 128
          %205 = vsyncadd %s199, %s204
          %s206 = smul.addr %s18, 128
          %s207 = scalar_lea.hbm %s0, %s206
          %s209 = sshll.u32 %s202, 4
          %s210 = int_to_ptr.vmem [resolvable:$true] %s209
          %212 = dma.hbm_to_vmem [thread:$0]  %s207, 128, %s210, %s199
        $region36: #{tpu_custom_call.1} parent=31 // pred_fallthru
          _
      $region32: #{tpu_custom_call.1} parent=5 // pred_fallthru
        _
      %p213 = scmp.le.s32.totalorder 1, %s18
      %p214 = scmp.lt.s32.totalorder %s18, 3
      %p215 = pnand %p213, %p214
      %p216 = pneg %p215
      // Predicated region
      $region37: #{tpu_custom_call.1} parent=5 // pred_check
        _
      $region38: #{tpu_custom_call.1} parent=5 // pred_check_branch
        %218 = sbr.rel (%p215) target = $region40
      $region39: #{tpu_custom_call.1} parent=5 // pred_region
        %s219 = ssub.s32 %s18, 1
        %s220 = sand.u32 %s31, 1
        %s221 = scalar_lea.sflag [#allocation3], %s220
        %s222 = sand.u32 %s31, 1
        %s223 = smul.addr %s222, 8
        %s224 = scalar_lea.vmem [#allocation2], %s223
        // Predicated region
        $region41: #{tpu_custom_call.1} parent=39 // pred_check
          %p225 = pneg %p44
        $region42: #{tpu_custom_call.1} parent=39 // pred_check_branch
          %227 = sbr.rel (%p225) target = $region44
        $region43: #{tpu_custom_call.1} parent=39 // pred_region
          %228 = dma.done %s221, 128
        $region44: #{tpu_custom_call.1} parent=39 // pred_fallthru
          _
        // Predicated region
        $region45: #{tpu_custom_call.1} parent=39 // pred_check
          %p229 = pneg %p65
        $region46: #{tpu_custom_call.1} parent=39 // pred_check_branch
          %231 = sbr.rel (%p229) target = $region48
        $region47: #{tpu_custom_call.1} parent=39 // pred_region
          %232 = dma.done [#allocation6], 512
        $region48: #{tpu_custom_call.1} parent=39 // pred_fallthru
          _
        %s233 = sand.u32 %s31, 1
        %s234 = scalar_lea.sflag [#allocation3], %s233
        %s235 = sand.u32 %s31, 1
        %s236 = smul.addr %s235, 8
        %s237 = scalar_lea.vmem [#allocation2], %s236
        %p238 = pneg %p44
        %p239 = pneg %p41
        %p240 = pneg %p65
        %p241 = pneg %p62
        %p242 = pneg %p86
        %p243 = pneg %p83
        %p244 = pneg %p107
        %p245 = pneg %p104
        %p246 = pneg %p128
        %p247 = pneg %p125
        %p248 = pneg %p154
        %p249 = pneg %p151
        %s250 = sand.u32 %s141, 1
        %s251 = scalar_lea.sflag [#allocation4], %s250
        %s252 = sand.u32 %s141, 1
        %s253 = smul.addr %s252, 2
        %s254 = scalar_lea.vmem [#allocation7], %s253
        %v255 = vld [vmem:[%s224] sm:$0xff]
        %v256 = vld [vmem:[#allocation5] sm:$0xff]
        %v257 = vld [vmem:[#allocation5 + $0x8] sm:$0xff]
        %v258 = vld [vmem:[#allocation5 + $0x10] sm:$0xff]
        %v259 = vld [vmem:[#allocation5 + $0x18] sm:$0xff]
        %v260 = vld [vmem:[%s2] sm:$0x1]
        %v262 = vlaneseq
        %v263 = vshrl.u32 %v262, 7
        %v264 = vsub.s32 0, %v263
        %v265 = vrot.slane %v260, %v264
        %vm267 = vcmask 261120
        %v269 = vsel %vm267, %v255, 0
        %271 = vmatprep.subr.mxu0 0.0
        %272 = vmatpush1.msra.mxu0 0.0
        %273 = vmatprep.subr.mxu0 0.0
        %274 = vmatpush1.msra.mxu0 0.0
        %275 = vmatprep.subr.mxu0 0.0
        %276 = vmatpush1.msra.mxu0 0.0
        %277 = vmatprep.subr.mxu0 0.0
        %278 = vmatpush1.msra.mxu0 0.0
        %279 = vmatprep.subr.mxu0 0.0
        %280 = vmatpush1.msra.mxu0 0.0
        %281 = vmatprep.subr.mxu0 0.0
        %282 = vmatpush1.msra.mxu0 0.0
        %283 = vmatprep.subr.mxu0 0.0
        %284 = vmatpush1.msra.mxu0 0.0
        %285 = vmatprep.subr.mxu0 0.0
        %286 = vmatpush1.msra.mxu0 0.0
        %287 = vmatprep.subr.mxu0 0.0
        %288 = vmatpush1.msra.mxu0 0.0
        %289 = vmatprep.subr.mxu0 0.0
        %290 = vmatpush1.msra.mxu0 0.0
        %291 = vmatprep.subr.mxu0 0.0
        %292 = vmatpush1.msra.mxu0 0.0
        %293 = vmatprep.subr.mxu0 0.0
        %294 = vmatpush1.msra.mxu0 0.0
        %295 = vmatprep.subr.mxu0 0.0
        %296 = vmatpush1.msra.mxu0 %v259
        %297 = vmatprep.subr.mxu0 0.0
        %298 = vmatpush1.msra.mxu0 %v258
        %299 = vmatprep.subr.mxu0 0.0
        %300 = vmatpush1.msra.mxu0 %v257
        %301 = vmatprep.subr.mxu0 0.0
        %302 = vmatpush1.msra.mxu0 %v256
        %303 = vmatprep.subr.mxu0 0.0
        %304 = vmatpush2.msra.mxu0 0.0
        %305 = vmatprep.subr.mxu0 0.0
        %306 = vmatpush2.msra.mxu0 0.0
        %307 = vmatprep.subr.mxu0 0.0
        %308 = vmatpush2.msra.mxu0 0.0
        %309 = vmatprep.subr.mxu0 0.0
        %310 = vmatpush2.msra.mxu0 0.0
        %311 = vmatprep.subr.mxu0 0.0
        %312 = vmatpush2.msra.mxu0 0.0
        %313 = vmatprep.subr.mxu0 0.0
        %314 = vmatpush2.msra.mxu0 0.0
        %315 = vmatprep.subr.mxu0 0.0
        %316 = vmatpush2.msra.mxu0 0.0
        %317 = vmatprep.subr.mxu0 0.0
        %318 = vmatpush2.msra.mxu0 0.0
        %319 = vmatprep.subr.mxu0 0.0
        %320 = vmatpush2.msra.mxu0 0.0
        %321 = vmatprep.subr.mxu0 0.0
        %322 = vmatpush2.msra.mxu0 0.0
        %323 = vmatprep.subr.mxu0 0.0
        %324 = vmatpush2.msra.mxu0 0.0
        %325 = vmatprep.subr.mxu0 0.0
        %326 = vmatpush2.msra.mxu0 0.0
        %327 = vmatprep.subr.mxu0 0.0
        %328 = vmatpush2.msra.mxu0 0.0
        %329 = vmatprep.subr.mxu0 0.0
        %330 = vmatpush2.msra.mxu0 0.0
        %331 = vmatprep.subr.mxu0 0.0
        %332 = vmatpush2.msra.mxu0 0.0
        %333 = vmatprep.subr.mxu0 0.0
        %334 = vmatpush2.msra.mxu0 0.0
        %335 = vmatprep.mubr.f32.mxu0 0.0
        %336 = vmatmul.mubr.f32.gmra.mxu0 %v269
        %v337 = vpop.f32.mrf.mxu0
        %v338 = vadd.f32 %v265, %v337
        %v339 = vpop.f32.mrf.mxu0
        %340 = vdwg.mxu0
        %vm341 = vcmp.ge.f32.partialorder %v338, 0.0
        %v342 = vmul.f32 %v338, 0.01
        %v343 = vsel %vm341, %v338, %v342
        %v344 = vld [vmem:[%s3] sm:$0x3]
        %v345 = vld [vmem:[%s4] sm:$0x3]
        %347 = vset.pattern.permute.xlu0 0
        %348 = vperm.xlu0 %347, %v345
        %v349 = vpop.permute.xlu0 %348
        %v352 = vsel %vm267, %v344, 0
        %v355 = vsel %vm267, %v343, 0
        %357 = vmatprep.subr.mxu0 0.0
        %358 = vmatpush1.xpose.msra.mxu0 0.0
        %359 = vmatprep.subr.mxu0 0.0
        %360 = vmatpush1.xpose.msra.mxu0 0.0
        %361 = vmatprep.subr.mxu0 0.0
        %362 = vmatpush1.xpose.msra.mxu0 0.0
        %363 = vmatprep.subr.mxu0 0.0
        %364 = vmatpush1.xpose.msra.mxu0 0.0
        %365 = vmatprep.subr.mxu0 0.0
        %366 = vmatpush1.xpose.msra.mxu0 0.0
        %367 = vmatprep.subr.mxu0 0.0
        %368 = vmatpush1.xpose.msra.mxu0 0.0
        %369 = vmatprep.subr.mxu0 0.0
        %370 = vmatpush1.xpose.msra.mxu0 0.0
        %371 = vmatprep.subr.mxu0 0.0
        %372 = vmatpush1.xpose.msra.mxu0 0.0
        %373 = vmatprep.subr.mxu0 0.0
        %374 = vmatpush1.xpose.msra.mxu0 0.0
        %375 = vmatprep.subr.mxu0 0.0
        %376 = vmatpush1.xpose.msra.mxu0 0.0
        %377 = vmatprep.subr.mxu0 0.0
        %378 = vmatpush1.xpose.msra.mxu0 0.0
        %379 = vmatprep.subr.mxu0 0.0
        %380 = vmatpush1.xpose.msra.mxu0 0.0
        %381 = vmatprep.subr.mxu0 0.0
        %382 = vmatpush1.xpose.msra.mxu0 0.0
        %383 = vmatprep.subr.mxu0 0.0
        %384 = vmatpush1.xpose.msra.mxu0 0.0
        %385 = vmatprep.subr.mxu0 0.0
        %386 = vmatpush1.xpose.msra.mxu0 0.0
        %387 = vmatprep.subr.mxu0 0.0
        %388 = vmatpush1.xpose.msra.mxu0 %v355
        %389 = vmatprep.subr.mxu0 0.0
        %390 = vmatpush2.xpose.msra.mxu0 0.0
        %391 = vmatprep.subr.mxu0 0.0
        %392 = vmatpush2.xpose.msra.mxu0 0.0
        %393 = vmatprep.subr.mxu0 0.0
        %394 = vmatpush2.xpose.msra.mxu0 0.0
        %395 = vmatprep.subr.mxu0 0.0
        %396 = vmatpush2.xpose.msra.mxu0 0.0
        %397 = vmatprep.subr.mxu0 0.0
        %398 = vmatpush2.xpose.msra.mxu0 0.0
        %399 = vmatprep.subr.mxu0 0.0
        %400 = vmatpush2.xpose.msra.mxu0 0.0
        %401 = vmatprep.subr.mxu0 0.0
        %402 = vmatpush2.xpose.msra.mxu0 0.0
        %403 = vmatprep.subr.mxu0 0.0
        %404 = vmatpush2.xpose.msra.mxu0 0.0
        %405 = vmatprep.subr.mxu0 0.0
        %406 = vmatpush2.xpose.msra.mxu0 0.0
        %407 = vmatprep.subr.mxu0 0.0
        %408 = vmatpush2.xpose.msra.mxu0 0.0
        %409 = vmatprep.subr.mxu0 0.0
        %410 = vmatpush2.xpose.msra.mxu0 0.0
        %411 = vmatprep.subr.mxu0 0.0
        %412 = vmatpush2.xpose.msra.mxu0 0.0
        %413 = vmatprep.subr.mxu0 0.0
        %414 = vmatpush2.xpose.msra.mxu0 0.0
        %415 = vmatprep.subr.mxu0 0.0
        %416 = vmatpush2.xpose.msra.mxu0 0.0
        %417 = vmatprep.subr.mxu0 0.0
        %418 = vmatpush2.xpose.msra.mxu0 0.0
        %419 = vmatprep.subr.mxu0 0.0
        %420 = vmatpush2.xpose.msra.mxu0 0.0
        %421 = vmatprep.mubr.f32.mxu0 0.0
        %422 = vmatmul.mubr.f32.gmra.mxu0 %v352
        %v423 = vpop.f32.mrf.mxu0
        %v424 = vadd.f32 %v349, %v423
        %v425 = vpop.f32.mrf.mxu0
        %426 = vdwg.mxu0
        %v427 = vmax.f32 %v424, 0.0
        %v428 = vand.u32 2147483647, %v424
        %v429 = vsub.f32 0.0, %v428
        %v430 = vmul.f32 %v429, 1.442695
        %v431 = vpow.pop %v430
        %v432 = vadd.f32 %v431, 1.0
        %v433 = vlog2.pop %v432
        %v434 = vmul.f32 %v433, 0.6931472
        %v435 = vmul.f32 -0.5, %v431
        %v436 = vadd.f32 %v435, 1.0
        %v437 = vmul.f32 %v436, %v431
        %v438 = vand.u32 2147483647, %v431
        %vm439 = vcmp.lt.f32.partialorder %v438, 0.0004427343
        %v440 = vsel %vm439, %v437, %v434
        %v441 = vadd.f32 %v427, %v440
        %v442 = vlaneseq
        %v443 = vshrl.u32 %v442, 7
        %vm444 = vcmp.eq.s32.totalorder %v443, 1
        %v445 = vsel %vm444, %v441, %v424
        %vm446 = vcmask 58368
        %447 = vst.msk [vmem:[%s254] sm:$0x3] %vm446, %v445
        %s448 = sand.u32 %s141, 1
        %s449 = scalar_lea.sflag [#allocation4], %s448
        %s450 = sand.u32 %s141, 1
        %s451 = smul.addr %s450, 2
        %s452 = scalar_lea.vmem [#allocation7], %s451
        // Predicated region
        $region49: #{tpu_custom_call.1} parent=39 // pred_check
          %p453 = pneg %p151
        $region50: #{tpu_custom_call.1} parent=39 // pred_check_branch
          %455 = sbr.rel (%p453) target = $region52
        $region51: #{tpu_custom_call.1} parent=39 // pred_region
          %s457 = ssub.s32 32, 32
          %458 = vsyncadd %s449, %s457
          %s459 = smul.addr %s23, 32
          %s460 = scalar_lea.hbm %s5, %s459
          %s462 = sshll.u32 %s452, 4
          %s463 = int_to_ptr.vmem [resolvable:$true] %s462
          %465 = dma.vmem_to_hbm [thread:$0]  %s463, 32, %s460, %s449
        $region52: #{tpu_custom_call.1} parent=39 // pred_fallthru
          _
      $region40: #{tpu_custom_call.1} parent=5 // pred_fallthru
        _
      %p466 = scmp.le.s32.totalorder 2, %s18
      // Predicated region
      $region53: #{tpu_custom_call.1} parent=5 // pred_check
        %p467 = pneg %p466
      $region54: #{tpu_custom_call.1} parent=5 // pred_check_branch
        %469 = sbr.rel (%p467) target = $region56
      $region55: #{tpu_custom_call.1} parent=5 // pred_region
        %s470 = ssub.s32 %s18, 2
        // Predicated region
        $region57: #{tpu_custom_call.1} parent=55 // pred_check
          %p471 = pneg %p157
        $region58: #{tpu_custom_call.1} parent=55 // pred_check_branch
          %473 = sbr.rel (%p471) target = $region60
        $region59: #{tpu_custom_call.1} parent=55 // pred_region
          %s474 = sand.u32 %s142, 1
          %s475 = scalar_lea.sflag [#allocation4], %s474
          %s476 = sand.u32 %s142, 1
          %s477 = smul.addr %s476, 2
          %s478 = scalar_lea.vmem [#allocation7], %s477
          %479 = dma.done %s475, 32
        $region60: #{tpu_custom_call.1} parent=55 // pred_fallthru
          _
      $region56: #{tpu_custom_call.1} parent=5 // pred_fallthru
        _
    $region6: #{tpu_custom_call.1} parent=1 // loop_footer
      %s22 = sadd.s32 1, %s18
    $region7: #{tpu_custom_call.1} parent=1 // loop_footer_branch
      %17 = sbr.rel target = $region3
    $region8: #{tpu_custom_call.1} parent=1 // loop_exit
      _
    %480 = vsyncpa [#allocation3], 1
    %s481 = scalar_lea.sflag [#allocation3], 1
    %482 = vsyncpa %s481, 1
    %483 = vsyncpa [#allocation6], 1
    %484 = vsyncpa [#allocation4], 1
    %s485 = scalar_lea.sflag [#allocation4], 1
    %486 = vsyncpa %s485, 1

</llo_original>
